<compile_context>
chip_gen: v7x
topology: tpu7x:2x2x1
jax: 0.10.0
libtpu: 0.0.40
codegen_flags: <defaults>
</compile_context>

<pallas_src>
import functools
import math

import jax
import jax.numpy as jnp
from jax.experimental import pallas as pl
from jax.experimental.pallas import tpu as pltpu


def _concat_mlp_kernel(h1rep_ref, h2_ref, out_ref, *, ncols, cw):
    # h1rep_ref: (1, TL1, CW)     h1 pre-tiled along lanes to one column width
    # h2_ref   : (1, 1, TL2*H)    lane-flattened h2 tile for this (b, j)
    # out_ref  : (1, TL1, TL2*H)  lane-dense output tile
    #
    # One 128*k-lane column at a time: a single add + max + store per column,
    # no output-tile-sized intermediate (the vst slot stays the only saturated
    # resource).  Static Python loop -> static slices (zero-cost views).
    h1rep = h1rep_ref[0]                                       # (TL1, CW)
    for c in range(ncols):
        h2_col = h2_ref[0, :, c * cw:(c + 1) * cw]             # (1, CW) -> bcast over sublanes
        out_ref[0, :, c * cw:(c + 1) * cw] = jnp.maximum(
            h1rep + h2_col, 0.0
        ).astype(out_ref.dtype)


def _pick_tile(dim, cap, ok):
    """Largest divisor of `dim` that is <= cap and satisfies ok(); else full dim."""
    for d in range(max(1, min(dim, cap)), 0, -1):
        if dim % d == 0 and ok(d):
            return d
    return dim  # full dimension is always a legal block


def concat_mlp(seq1, seq2, w1, b1, w2, mask1=None, mask2=None):
    """Pallas-backed ConcatMLP forward.

    seq1: (B, L1, D1)   seq2: (B, L2, D2)
    w1:   (D1, H)  (transposed nn.Linear weight)   b1: (H,)   w2: (D2, H)
    mask1: (B, L1) bool or None                    mask2: (B, L2) bool or None
    Returns (out (B, L1, L2, H), mask (B, L1, L2) or None).
    """
    B, L1, D1 = seq1.shape
    _, L2, D2 = seq2.shape
    H = w1.shape[1]
    out_dtype = jnp.result_type(seq1.dtype, w1.dtype)
    itemsize = jnp.dtype(out_dtype).itemsize

    # Tiny projections (B*(L1+L2)*H elems) -- negligible next to the B*L1*L2*H
    # output; done once in XLA so the Pallas hot loop never redoes them.
    h1 = jnp.einsum("bld,dh->blh", seq1, w1) + b1            # (B, L1, H)
    h2 = jnp.einsum("bld,dh->blh", seq2, w2)                 # (B, L2, H)

    # --- lane-column geometry --------------------------------------------------
    # One output "lane column" is CW = lcm(H, 128) lanes wide and covers q2 = CW/H
    # consecutive l2 positions.  h1's contribution to any column is just h1
    # repeated q2 times along the lane axis -> pre-tile it once here (tiny array).
    g = math.gcd(H, 128)
    cw = H * (128 // g)                     # lcm(H, 128); multiple of 128
    q2 = cw // H                            # l2 positions per lane column
    h1_rep = jnp.tile(h1, (1, 1, q2))       # (B, L1, CW)

    # Pad L2 to a multiple of q2 so every output tile has a 128-multiple lane
    # width (never degrades into masked vst.msk partial stores).
    L2p = ((L2 + q2 - 1) // q2) * q2
    if L2p != L2:
        h2 = jnp.pad(h2, ((0, 0), (0, L2p - L2), (0, 0)))
    h2_flat = h2.reshape(B, 1, L2p * H)     # lane-flattened (l2, h)

    # --- tile selection (generation-safe) ---------------------------------------
    # tl1: sublane-rich; quantum depends on dtype packing (8 rows/sublane-group
    # for 4-byte, 16 for 2-byte, 32 for 1-byte).  Falls back to full L1.
    sub_q = {4: 8, 2: 16, 1: 32}.get(itemsize, 8)
    tl1 = _pick_tile(L1, 256, lambda d: d % sub_q == 0)

    # tl2: ~8 MiB output tile (amortizes the ~0.35 us per-step overhead; measured
    # lane-width sweeps keep improving well past 4096 lanes), lane-dense last dim.
    out_tile_budget = 8 * 1024 * 1024
    lane_cap = max(1, 16384 // max(H, 1))
    byte_cap = max(1, out_tile_budget // (tl1 * H * itemsize))
    tl2 = _pick_tile(L2p, min(lane_cap, byte_cap), lambda d: d % q2 == 0)

    # v7x megacore: both TensorCores share 3.2 TB/s of HBM writeback -- make sure
    # the parallel grid has >= 2 steps when the shapes allow it (prefer splitting
    # the i axis so per-core h1-block reuse is preserved).
    if B * (L1 // tl1) * (L2p // tl2) < 2:
        t1_alt = _pick_tile(L1, max(1, L1 // 2), lambda d: d % sub_q == 0)
        if L1 // t1_alt >= 2:
            tl1 = t1_alt
        else:
            t2_alt = _pick_tile(L2p, max(1, L2p // 2), lambda d: d % q2 == 0)
            if L2p // t2_alt >= 2:
                tl2 = t2_alt

    grid = (B, L1 // tl1, L2p // tl2)
    ncols = (tl2 * H) // cw

    # VMEM budget: actual footprint (double-buffered in/out blocks) + slack, so we
    # don't starve neighboring XLA fusions on v7x (64 MiB physical per TC).
    out_tile_bytes = tl1 * tl2 * H * itemsize
    h1_tile_bytes = tl1 * cw * itemsize
    h2_tile_bytes = tl2 * H * itemsize
    vmem_limit = min(
        2 * (out_tile_bytes + h1_tile_bytes + h2_tile_bytes) + (2 << 20),
        48 * 1024 * 1024,
    )

    # Advisory cost: memory-dominated custom call (helps XLA overlap neighbors).
    cost = pl.CostEstimate(
        flops=2 * B * L1 * L2p * H,
        transcendentals=0,
        bytes_accessed=itemsize * (B * L1 * L2p * H + B * (L1 * cw // H + L2p) * H),
    )

    out_flat = pl.pallas_call(
        functools.partial(_concat_mlp_kernel, ncols=ncols, cw=cw),
        out_shape=jax.ShapeDtypeStruct((B, L1, L2p * H), out_dtype),
        grid_spec=pltpu.PrefetchScalarGridSpec(
            num_scalar_prefetch=0,
            grid=grid,
            in_specs=[
                # h1 replica block changes only with (b, i).
                pl.BlockSpec((1, tl1, cw), lambda b, i, j: (b, i, 0)),
                # h2 tile changes only with (b, j).
                pl.BlockSpec((1, 1, tl2 * H), lambda b, i, j: (b, 0, j)),
            ],
            out_specs=pl.BlockSpec((1, tl1, tl2 * H), lambda b, i, j: (b, i, j)),
        ),
        compiler_params=pltpu.CompilerParams(
            # Every grid step writes a distinct output block -> all axes parallel
            # (lets v7x shard the work across its 2 TensorCores).
            dimension_semantics=("parallel", "parallel", "parallel"),
            vmem_limit_bytes=int(vmem_limit),
        ),
        cost_estimate=cost,
    )(h1_rep.astype(out_dtype), h2_flat.astype(out_dtype))

    out = out_flat.reshape(B, L1, L2p, H)   # contiguous -> free layout change
    if L2p != L2:
        out = out[:, :, :L2, :]             # drop the lane-density padding rows

    mask = None
    if mask1 is not None and mask2 is not None:
        # mask glue (trivial elementwise broadcast) kept in plain JAX
        mask = mask1[:, :, None] & mask2[:, None, :]
    return out, mask


if __name__ == "__main__":
    B, L1, L2, D1, D2, H = 2, 8, 8, 16, 16, 32

    key = jax.random.PRNGKey(0)
    k1, k2, k3, k4, k5 = jax.random.split(key, 5)

    seq1 = jax.random.normal(k1, (B, L1, D1), dtype=jnp.float32)
    seq2 = jax.random.normal(k2, (B, L2, D2), dtype=jnp.float32)

    # nn.Linear params (stored transposed: W1 (D1, H), b1 (H,), W2 (D2, H))
    w1 = jax.random.normal(k3, (D1, H), dtype=jnp.float32) * 0.1
    b1 = jax.random.normal(k4, (H,), dtype=jnp.float32) * 0.1
    w2 = jax.random.normal(k5, (D2, H), dtype=jnp.float32) * 0.1

    mask1 = jnp.ones((B, L1), dtype=bool).at[:, -2:].set(False)
    mask2 = jnp.ones((B, L2), dtype=bool).at[:, -1:].set(False)

    out, mask = concat_mlp(seq1, seq2, w1, b1, w2, mask1, mask2)
    out = jax.block_until_ready(out)
    mask = jax.block_until_ready(mask)

    # Reference check (pure JAX)
    h1_ref = seq1 @ w1 + b1
    h2_ref = seq2 @ w2
    ref = jnp.maximum(h1_ref[:, :, None, :] + h2_ref[:, None, :, :], 0.0)
    ref_mask = mask1[:, :, None] & mask2[:, None, :]
    assert out.shape == (B, L1, L2, H)
    assert mask.shape == (B, L1, L2)
    assert jnp.allclose(out, ref, atol=1e-5, rtol=1e-5)
    assert jnp.array_equal(mask, ref_mask)

    print("KERNEL_OK")
</pallas_src>

<mosaic_0001>
module attributes {stable_mosaic.version = 11 : i64} {
  func.func @_concat_mlp_kernel(%arg0: i32, %arg1: i32, %arg2: i32, %arg3: memref<1x8x128xf32, #tpu.memory_space<vmem>>, %arg4: memref<1x1x256xf32, #tpu.memory_space<vmem>>, %arg5: memref<1x8x256xf32, #tpu.memory_space<vmem>>) attributes {dimension_semantics = [#tpu.dimension_semantics<parallel>, #tpu.dimension_semantics<parallel>, #tpu.dimension_semantics<parallel>], iteration_bounds = array<i64: 2, 1, 1>, scalar_prefetch = 0 : i64, scratch_operands = 0 : i64, tpu.core_type = #tpu.core_type<tc>, window_params = [{transform_indices = @transform_0, window_bounds = array<i64: 1, 8, 128>}, {transform_indices = @transform_1, window_bounds = array<i64: 1, 1, 256>}, {transform_indices = @transform_2, window_bounds = array<i64: 1, 8, 256>}]} {
    %c0 = arith.constant 0 : index
    %c0_0 = arith.constant 0 : index
    %c0_1 = arith.constant 0 : index
    %0 = vector.load %arg3[%c0, %c0_0, %c0_1] : memref<1x8x128xf32, #tpu.memory_space<vmem>>, vector<1x8x128xf32>
    %1 = vector.shape_cast %0 : vector<1x8x128xf32> to vector<8x128xf32>
    %c0_2 = arith.constant 0 : index
    %c0_3 = arith.constant 0 : index
    %c0_4 = arith.constant 0 : index
    %2 = vector.load %arg4[%c0_2, %c0_3, %c0_4] : memref<1x1x256xf32, #tpu.memory_space<vmem>>, vector<1x1x128xf32>
    %3 = vector.shape_cast %2 : vector<1x1x128xf32> to vector<1x128xf32>
    %4 = vector.broadcast %3 : vector<1x128xf32> to vector<8x128xf32>
    %5 = arith.addf %1, %4 : vector<8x128xf32>
    %cst = arith.constant 0.000000e+00 : f32
    %6 = vector.broadcast %cst : f32 to vector<8x128xf32>
    %7 = arith.maximumf %5, %6 : vector<8x128xf32>
    %c0_5 = arith.constant 0 : index
    %c0_6 = arith.constant 0 : index
    %c0_7 = arith.constant 0 : index
    %8 = vector.load %arg5[%c0_5, %c0_6, %c0_7] : memref<1x8x256xf32, #tpu.memory_space<vmem>>, vector<1x8x128xf32>
    %9 = vector.shape_cast %8 : vector<1x8x128xf32> to vector<8x128xf32>
    %10 = vector.shape_cast %7 : vector<8x128xf32> to vector<1x8x128xf32>
    tpu.vector_store %arg5[%c0_5, %c0_6, %c0_7], %10 {strides = array<i32>} : memref<1x8x256xf32, #tpu.memory_space<vmem>>, vector<1x8x128xf32>,
    %c0_8 = arith.constant 0 : index
    %c0_9 = arith.constant 0 : index
    %c128 = arith.constant 128 : index
    %11 = vector.load %arg4[%c0_8, %c0_9, %c128] : memref<1x1x256xf32, #tpu.memory_space<vmem>>, vector<1x1x128xf32>
    %12 = vector.shape_cast %11 : vector<1x1x128xf32> to vector<1x128xf32>
    %13 = vector.broadcast %12 : vector<1x128xf32> to vector<8x128xf32>
    %14 = arith.addf %1, %13 : vector<8x128xf32>
    %cst_10 = arith.constant 0.000000e+00 : f32
    %15 = vector.broadcast %cst_10 : f32 to vector<8x128xf32>
    %16 = arith.maximumf %14, %15 : vector<8x128xf32>
    %c0_11 = arith.constant 0 : index
    %c0_12 = arith.constant 0 : index
    %c128_13 = arith.constant 128 : index
    %17 = vector.load %arg5[%c0_11, %c0_12, %c128_13] : memref<1x8x256xf32, #tpu.memory_space<vmem>>, vector<1x8x128xf32>
    %18 = vector.shape_cast %17 : vector<1x8x128xf32> to vector<8x128xf32>
    %19 = vector.shape_cast %16 : vector<8x128xf32> to vector<1x8x128xf32>
    tpu.vector_store %arg5[%c0_11, %c0_12, %c128_13], %19 {strides = array<i32>} : memref<1x8x256xf32, #tpu.memory_space<vmem>>, vector<1x8x128xf32>,
    return
  }
  func.func @transform_0(%arg0: i32, %arg1: i32, %arg2: i32) -> (i32, i32, i32) {
    %c0_i32 = arith.constant 0 : i32
    %c0_i32_0 = arith.constant 0 : i32
    return %arg0, %arg1, %c0_i32 : i32, i32, i32
  }
  func.func @transform_1(%arg0: i32, %arg1: i32, %arg2: i32) -> (i32, i32, i32) {
    %c0_i32 = arith.constant 0 : i32
    %c0_i32_0 = arith.constant 0 : i32
    return %arg0, %c0_i32, %arg2 : i32, i32, i32
  }
  func.func @transform_2(%arg0: i32, %arg1: i32, %arg2: i32) -> (i32, i32, i32) {
    %c0_i32 = arith.constant 0 : i32
    return %arg0, %arg1, %arg2 : i32, i32, i32
  }
}

</mosaic_0001>

<llo_original>
// kernel: tpu_custom_call.1
$region0: #{tpu_custom_call.1}
  #allocation0 [shape = 'u32[]', space=smem, size = 0x4, offset = 0x4, fixed_abs, tag = 'smem constant byte address 0x4 - core index']
  #allocation1 [shape = 'u32[144,128]{1,0:T(1,128)}', space=vmem, size = 0x12000, scoped, tag = 'internal scratch']
  %s0 = inlined_call_operand.hbm [shape: f32[2,8,128], index: 0, kind: input, shape index: {}]
  %s1 = inlined_call_operand.hbm [shape: f32[2,1,256], index: 1, kind: input, shape index: {}]
  %s2 = inlined_call_operand.hbm [shape: f32[2,8,256], index: 2, kind: output, shape index: {}]
  %s3 = sld [smem:[#allocation0]]
  $region49: #{tpu_custom_call.1} parent=0
    _
  %s5 = ssub.s32 1, %s3
  %s6 = scalar_select 0, %s5, %s3
  $region1: #{tpu_custom_call.1} parent=0
    #allocation2 [shape = 'u8[8192]{0}', space=vmem, size = 0x2000, scoped, tag = 'input window, operand 0']
    #allocation3 [shape = 's32[2]{0}', space=sflag, size = 0x8, scoped, tag = 'scoped memory for tpu_custom_call.1']
    #allocation4 [shape = 's32[2]{0}', space=sflag, size = 0x8, scoped, tag = 'scoped memory for tpu_custom_call.1']
    #allocation5 [shape = 'u8[2048]{0}', space=vmem, size = 0x800, scoped, tag = 'input window, operand 1']
    #allocation6 [shape = 's32[2]{0}', space=sflag, size = 0x8, scoped, tag = 'scoped memory for tpu_custom_call.1']
    #allocation7 [shape = 'u8[16384]{0}', space=vmem, size = 0x4000, scoped, tag = 'output window, operand 0']
    %7 = vsyncpa [#allocation3], 0
    %s8 = scalar_lea.sflag [#allocation3], 1
    %9 = vsyncpa %s8, 0
    %10 = vsyncpa [#allocation6], 0
    %s11 = scalar_lea.sflag [#allocation6], 1
    %12 = vsyncpa %s11, 0
    %13 = vsyncpa [#allocation4], 0
    %s14 = scalar_lea.sflag [#allocation4], 1
    %15 = vsyncpa %s14, 0
    loop: start=0, step=1, limit=4
    $region2: #{tpu_custom_call.1} parent=1 // loop_pre_header
      _
    $region3: #{tpu_custom_call.1} parent=1 // loop_header
      %s17 = sphi 0, %s21
      %p18 = scmp.ge.s32.totalorder %s17, 4
      %s24 = sphi 0, %s43
      %s25 = sphi 0, %s39
      %s26 = sphi 0, %s35
      %s27 = sphi 0, %s24
      %s28 = sphi 0, %s25
      %s29 = sphi 0, %s26
      %s30 = sphi 0, %s27
      %s31 = sphi 0, %s28
      %s32 = sphi 0, %s29
      %s48 = sphi 0, %s50
      %s51 = sphi 0, %s48
      %s52 = sphi 0, %s51
      %s68 = sphi 0, %s52
      %s76 = sphi 0, %s78
      %s79 = sphi 0, %s76
      %s80 = sphi 0, %s79
      %s96 = sphi 0, %s80
      %s106 = sphi 0, %s108
      %s109 = sphi 0, %s106
      %s110 = sphi 0, %s109
      %s126 = sphi 0, %s110
    $region4: #{tpu_custom_call.1} parent=1 // loop_header_branch
      %20 = sbr.rel (%p18) target = $region8
    $region5: #{tpu_custom_call.1} parent=1 // loop_body
      %s22 = ssub.s32 %s17, 1
      %s23 = ssub.s32 %s17, 2
      %s33 = sadd.s32 1, %s26
      %p34 = scmp.ge.s32.totalorder %s33, 1
      %s35 = scalar_select %p34, 0, %s33
      %s36 = sadd.s32 1, %s25
      %s37 = scalar_select %p34, %s36, %s25
      %p38 = scmp.ge.s32.totalorder %s37, 1
      %s39 = scalar_select %p38, 0, %s37
      %s40 = sadd.s32 1, %s24
      %s41 = scalar_select %p38, %s40, %s24
      %p42 = scmp.ge.s32.totalorder %s41, 2
      %s43 = scalar_select %p42, 0, %s41
      %s44 = ssub.s32 %s24, %s43
      %s45 = ssub.s32 %s25, %s39
      %s46 = sor.u32 %s44, %s45
      %p47 = scmp.eq.s32.totalorder %s46, 0
      %s49 = sadd.s32 %s48, 1
      %s50 = scalar_select %p47, %s48, %s49
      %p53 = pneg %p47
      %p54 = scmp.eq.s32.totalorder %s17, 1
      %p55 = por %p53, %p54
      %p56 = scmp.ne.s32.totalorder %s48, %s51
      %p57 = scmp.eq.s32.totalorder %s17, 0
      %p58 = por %p56, %p57
      %p59 = scmp.ne.s32.totalorder %s48, %s51
      %p60 = scmp.eq.s32.totalorder %s22, 1
      %p61 = por %p59, %p60
      %p62 = scmp.ne.s32.totalorder %s51, %s52
      %p63 = scmp.eq.s32.totalorder %s22, 0
      %p64 = por %p62, %p63
      %p65 = scmp.ne.s32.totalorder %s51, %s52
      %p66 = scmp.eq.s32.totalorder %s23, 1
      %p67 = por %p65, %p66
      %p69 = scmp.ne.s32.totalorder %s52, %s68
      %p70 = scmp.eq.s32.totalorder %s23, 0
      %p71 = por %p69, %p70
      %s72 = ssub.s32 %s24, %s43
      %s73 = ssub.s32 %s26, %s35
      %s74 = sor.u32 %s72, %s73
      %p75 = scmp.eq.s32.totalorder %s74, 0
      %s77 = sadd.s32 %s76, 1
      %s78 = scalar_select %p75, %s76, %s77
      %p81 = pneg %p75
      %p82 = scmp.eq.s32.totalorder %s17, 1
      %p83 = por %p81, %p82
      %p84 = scmp.ne.s32.totalorder %s76, %s79
      %p85 = scmp.eq.s32.totalorder %s17, 0
      %p86 = por %p84, %p85
      %p87 = scmp.ne.s32.totalorder %s76, %s79
      %p88 = scmp.eq.s32.totalorder %s22, 1
      %p89 = por %p87, %p88
      %p90 = scmp.ne.s32.totalorder %s79, %s80
      %p91 = scmp.eq.s32.totalorder %s22, 0
      %p92 = por %p90, %p91
      %p93 = scmp.ne.s32.totalorder %s79, %s80
      %p94 = scmp.eq.s32.totalorder %s23, 1
      %p95 = por %p93, %p94
      %p97 = scmp.ne.s32.totalorder %s80, %s96
      %p98 = scmp.eq.s32.totalorder %s23, 0
      %p99 = por %p97, %p98
      %s100 = ssub.s32 %s24, %s43
      %s101 = ssub.s32 %s25, %s39
      %s102 = sor.u32 %s100, %s101
      %s103 = ssub.s32 %s26, %s35
      %s104 = sor.u32 %s102, %s103
      %p105 = scmp.eq.s32.totalorder %s104, 0
      %s107 = sadd.s32 %s106, 1
      %s108 = scalar_select %p105, %s106, %s107
      %p111 = pneg %p105
      %p112 = scmp.eq.s32.totalorder %s17, 1
      %p113 = por %p111, %p112
      %p114 = scmp.ne.s32.totalorder %s106, %s109
      %p115 = scmp.eq.s32.totalorder %s17, 0
      %p116 = por %p114, %p115
      %p117 = scmp.ne.s32.totalorder %s106, %s109
      %p118 = scmp.eq.s32.totalorder %s22, 1
      %p119 = por %p117, %p118
      %p120 = scmp.ne.s32.totalorder %s109, %s110
      %p121 = scmp.eq.s32.totalorder %s22, 0
      %p122 = por %p120, %p121
      %p123 = scmp.ne.s32.totalorder %s109, %s110
      %p124 = scmp.eq.s32.totalorder %s23, 1
      %p125 = por %p123, %p124
      %p127 = scmp.ne.s32.totalorder %s110, %s126
      %p128 = scmp.eq.s32.totalorder %s23, 0
      %p129 = por %p127, %p128
      %p130 = scmp.le.s32.totalorder 1, %s17
      %p131 = scmp.lt.s32.totalorder %s17, 3
      %p132 = pnand %p130, %p131
      %p133 = pneg %p132
      // Predicated region
      $region9: #{tpu_custom_call.1} parent=5 // pred_check
        _
      $region10: #{tpu_custom_call.1} parent=5 // pred_check_branch
        %135 = sbr.rel (%p132) target = $region12
      $region11: #{tpu_custom_call.1} parent=5 // pred_region
        %s136 = ssub.s32 %s17, 1
      $region12: #{tpu_custom_call.1} parent=5 // pred_fallthru
        _
      %p137 = scmp.lt.s32.totalorder %s17, 2
      // Predicated region
      $region13: #{tpu_custom_call.1} parent=5 // pred_check
        %p138 = pneg %p137
      $region14: #{tpu_custom_call.1} parent=5 // pred_check_branch
        %140 = sbr.rel (%p138) target = $region16
      $region15: #{tpu_custom_call.1} parent=5 // pred_region
        // Predicated region
        $region17: #{tpu_custom_call.1} parent=15 // pred_check
          %p141 = pneg %p58
        $region18: #{tpu_custom_call.1} parent=15 // pred_check_branch
          %143 = sbr.rel (%p141) target = $region20
        $region19: #{tpu_custom_call.1} parent=15 // pred_region
          %s144 = sand.u32 %s48, 1
          %s145 = scalar_lea.sflag [#allocation3], %s144
          %s146 = sand.u32 %s48, 1
          %s147 = smul.addr %s146, 8
          %s148 = scalar_lea.vmem [#allocation2], %s147
          %s150 = ssub.s32 128, 128
          %151 = vsyncadd %s145, %s150
          %s152 = sadd.s32 %s25, %s24
          %s153 = smul.addr %s152, 128
          %s154 = scalar_lea.hbm %s0, %s153
          %s156 = sshll.u32 %s148, 4
          %s157 = int_to_ptr.vmem [resolvable:$true] %s156
          %159 = dma.hbm_to_vmem [thread:$0]  %s154, 128, %s157, %s145
        $region20: #{tpu_custom_call.1} parent=15 // pred_fallthru
          _
        // Predicated region
        $region21: #{tpu_custom_call.1} parent=15 // pred_check
          %p160 = pneg %p86
        $region22: #{tpu_custom_call.1} parent=15 // pred_check_branch
          %162 = sbr.rel (%p160) target = $region24
        $region23: #{tpu_custom_call.1} parent=15 // pred_region
          %s163 = sand.u32 %s76, 1
          %s164 = scalar_lea.sflag [#allocation6], %s163
          %s165 = sand.u32 %s76, 1
          %s166 = smul.addr %s165, 2
          %s167 = scalar_lea.vmem [#allocation5], %s166
          %s168 = smul.u32 2, %s26
          %s170 = ssub.s32 32, 32
          %171 = vsyncadd %s164, %s170
          %s172 = smul.addr %s24, 2
          %s173 = sadd.s32 %s168, %s172
          %s174 = smul.addr %s173, 16
          %s175 = scalar_lea.hbm %s1, %s174
          %s177 = sshll.u32 %s167, 4
          %s178 = int_to_ptr.vmem [resolvable:$true] %s177
          %180 = dma.hbm_to_vmem [thread:$0]  %s175, 32, %s178, %s164
        $region24: #{tpu_custom_call.1} parent=15 // pred_fallthru
          _
      $region16: #{tpu_custom_call.1} parent=5 // pred_fallthru
        _
      %p181 = scmp.le.s32.totalorder 1, %s17
      %p182 = scmp.lt.s32.totalorder %s17, 3
      %p183 = pnand %p181, %p182
      %p184 = pneg %p183
      // Predicated region
      $region25: #{tpu_custom_call.1} parent=5 // pred_check
        _
      $region26: #{tpu_custom_call.1} parent=5 // pred_check_branch
        %186 = sbr.rel (%p183) target = $region28
      $region27: #{tpu_custom_call.1} parent=5 // pred_region
        %s187 = ssub.s32 %s17, 1
        %s188 = sand.u32 %s51, 1
        %s189 = scalar_lea.sflag [#allocation3], %s188
        %s190 = sand.u32 %s51, 1
        %s191 = smul.addr %s190, 8
        %s192 = scalar_lea.vmem [#allocation2], %s191
        // Predicated region
        $region29: #{tpu_custom_call.1} parent=27 // pred_check
          %p193 = pneg %p64
        $region30: #{tpu_custom_call.1} parent=27 // pred_check_branch
          %195 = sbr.rel (%p193) target = $region32
        $region31: #{tpu_custom_call.1} parent=27 // pred_region
          %196 = dma.done %s189, 128
        $region32: #{tpu_custom_call.1} parent=27 // pred_fallthru
          _
        %s197 = sand.u32 %s79, 1
        %s198 = scalar_lea.sflag [#allocation6], %s197
        %s199 = sand.u32 %s79, 1
        %s200 = smul.addr %s199, 2
        %s201 = scalar_lea.vmem [#allocation5], %s200
        // Predicated region
        $region33: #{tpu_custom_call.1} parent=27 // pred_check
          %p202 = pneg %p92
        $region34: #{tpu_custom_call.1} parent=27 // pred_check_branch
          %204 = sbr.rel (%p202) target = $region36
        $region35: #{tpu_custom_call.1} parent=27 // pred_region
          %205 = dma.done %s198, 32
        $region36: #{tpu_custom_call.1} parent=27 // pred_fallthru
          _
        %s206 = sand.u32 %s51, 1
        %s207 = scalar_lea.sflag [#allocation3], %s206
        %s208 = sand.u32 %s51, 1
        %s209 = smul.addr %s208, 8
        %s210 = scalar_lea.vmem [#allocation2], %s209
        %p211 = pneg %p64
        %p212 = pneg %p61
        %s213 = sand.u32 %s79, 1
        %s214 = scalar_lea.sflag [#allocation6], %s213
        %s215 = sand.u32 %s79, 1
        %s216 = smul.addr %s215, 2
        %s217 = scalar_lea.vmem [#allocation5], %s216
        %p218 = pneg %p92
        %p219 = pneg %p89
        %p220 = pneg %p122
        %p221 = pneg %p119
        %s222 = sand.u32 %s109, 1
        %s223 = scalar_lea.sflag [#allocation4], %s222
        %s224 = sand.u32 %s109, 1
        %s225 = smul.addr %s224, 16
        %s226 = scalar_lea.vmem [#allocation7], %s225
        %s227 = smul.u32 2, %s29
        %s228 = smul.u32 2, %s29
        %v229 = vld [vmem:[%s192] sm:$0xff]
        %v230 = vld [vmem:[%s201] sm:$0x1]
        %v232 = vlaneseq
        %v233 = vshrl.u32 %v232, 7
        %v234 = vsub.s32 0, %v233
        %v235 = vrot.slane %v230, %v234
        %v237 = vadd.f32 %v229, %v235
        %v238 = vmax.f32 %v237, 0.0
        %239 = vst [vmem:[%s226] sm:$0xff] %v238
        %v240 = vld [vmem:[%s201 + $0x1] sm:$0x1]
        %v242 = vlaneseq
        %v243 = vshrl.u32 %v242, 7
        %v244 = vsub.s32 0, %v243
        %v245 = vrot.slane %v240, %v244
        %v247 = vadd.f32 %v229, %v245
        %v248 = vmax.f32 %v247, 0.0
        %249 = vst [vmem:[%s226 + $0x8] sm:$0xff] %v248
        %s250 = sand.u32 %s109, 1
        %s251 = scalar_lea.sflag [#allocation4], %s250
        %s252 = sand.u32 %s109, 1
        %s253 = smul.addr %s252, 16
        %s254 = scalar_lea.vmem [#allocation7], %s253
        // Predicated region
        $region37: #{tpu_custom_call.1} parent=27 // pred_check
          %p255 = pneg %p119
        $region38: #{tpu_custom_call.1} parent=27 // pred_check_branch
          %257 = sbr.rel (%p255) target = $region40
        $region39: #{tpu_custom_call.1} parent=27 // pred_region
          %s258 = smul.u32 2, %s29
          %s260 = ssub.s32 256, 256
          %261 = vsyncadd %s251, %s260
          %s262 = smul.addr %s28, 2
          %s263 = sadd.s32 %s258, %s262
          %s264 = smul.addr %s27, 2
          %s265 = sadd.s32 %s263, %s264
          %s266 = smul.addr %s265, 128
          %s267 = scalar_lea.hbm %s2, %s266
          %s269 = sshll.u32 %s254, 4
          %s270 = int_to_ptr.vmem [resolvable:$true] %s269
          %272 = dma.vmem_to_hbm [thread:$0]  %s270, 256, %s267, %s251
        $region40: #{tpu_custom_call.1} parent=27 // pred_fallthru
          _
      $region28: #{tpu_custom_call.1} parent=5 // pred_fallthru
        _
      %p273 = scmp.le.s32.totalorder 2, %s17
      // Predicated region
      $region41: #{tpu_custom_call.1} parent=5 // pred_check
        %p274 = pneg %p273
      $region42: #{tpu_custom_call.1} parent=5 // pred_check_branch
        %276 = sbr.rel (%p274) target = $region44
      $region43: #{tpu_custom_call.1} parent=5 // pred_region
        %s277 = ssub.s32 %s17, 2
        // Predicated region
        $region45: #{tpu_custom_call.1} parent=43 // pred_check
          %p278 = pneg %p125
        $region46: #{tpu_custom_call.1} parent=43 // pred_check_branch
          %280 = sbr.rel (%p278) target = $region48
        $region47: #{tpu_custom_call.1} parent=43 // pred_region
          %s281 = sand.u32 %s110, 1
          %s282 = scalar_lea.sflag [#allocation4], %s281
          %s283 = sand.u32 %s110, 1
          %s284 = smul.addr %s283, 16
          %s285 = scalar_lea.vmem [#allocation7], %s284
          %286 = dma.done %s282, 256
        $region48: #{tpu_custom_call.1} parent=43 // pred_fallthru
          _
      $region44: #{tpu_custom_call.1} parent=5 // pred_fallthru
        _
    $region6: #{tpu_custom_call.1} parent=1 // loop_footer
      %s21 = sadd.s32 1, %s17
    $region7: #{tpu_custom_call.1} parent=1 // loop_footer_branch
      %16 = sbr.rel target = $region3
    $region8: #{tpu_custom_call.1} parent=1 // loop_exit
      _
    %287 = vsyncpa [#allocation3], 1
    %s288 = scalar_lea.sflag [#allocation3], 1
    %289 = vsyncpa %s288, 1
    %290 = vsyncpa [#allocation6], 1
    %s291 = scalar_lea.sflag [#allocation6], 1
    %292 = vsyncpa %s291, 1
    %293 = vsyncpa [#allocation4], 1
    %s294 = scalar_lea.sflag [#allocation4], 1
    %295 = vsyncpa %s294, 1

</llo_original>
